<compile_context>
chip_gen: v6e
topology: v6e:2x2x1
jax: 0.10.0
libtpu: 0.0.40
codegen_flags: <defaults>
</compile_context>

<pallas_src>
import functools

import jax
import jax.numpy as jnp
from jax.experimental import pallas as pl
from jax.experimental.pallas import tpu as pltpu


def _rup(x, m):
    return (x + m - 1) // m * m


def _projector_kernel(x_ref, w1_ref, b1_ref, w2_ref, b2_ref, o_ref, *, pool_pairs):
    """Fused: [H-pair pool] -> matmul(W1, W-pair folded into K) -> bias+ReLU -> matmul(W2) -> bias.

    x_ref is either
      (T, 2*Wp, 2*C)  pool_pairs=True : leading dim = output H-rows, sublane dim holds the
                      two source H-rows (first Wp then last Wp), lane dim = W-pair x channels.
      (T, K)          pool_pairs=False: leading dim = output pixels, K = C or 2*C.
    """
    x = x_ref[...]
    if x.ndim == 3:
        t, s_in, k = x.shape
        if pool_pairs:
            s_out = s_in // 2
            # H-pair sum: aligned sublane slices (Wp % 8 == 0 guaranteed by the wrapper).
            x = x[:, :s_out, :] + x[:, s_out:, :]
        else:
            s_out = s_in
        # Collapse (rows, Wp) -> pixels; layout-preserving since s_out % 8 == 0.
        x = x.reshape(t * s_out, k)

    h = jnp.dot(x, w1_ref[...], preferred_element_type=jnp.float32)
    h = jnp.maximum(h + b1_ref[...], 0.0)                      # conv1 bias + ReLU (f32 VPU)
    y = jnp.dot(h.astype(w2_ref.dtype), w2_ref[...], preferred_element_type=jnp.float32)
    o_ref[...] = (y + b2_ref[...]).astype(o_ref.dtype)         # conv2 bias


def projector_forward(x, params, *, downsample=True, channels_last=False,
                      mxu_bf16=False, target_pixels_per_tile=1024):
    """x: (N, C, H, W) (or NHWC if channels_last).  params: matmul-layout conv weights."""
    w1, b1, w2, b2 = params["w1"], params["b1"], params["w2"], params["b2"]
    c = w1.shape[0]
    out_dim = w2.shape[1]
    out_pad = _rup(out_dim, 128)                               # lane-dense output stores

    # ---- input layout: only the NCHW->NHWC transpose copies; everything else is a free view ----
    x_nhwc = x if channels_last else jnp.transpose(x, (0, 2, 3, 1))
    n, h, w, cx = x_nhwc.shape
    assert cx == c, (cx, c)
    orig_dtype = x.dtype
    cdt = jnp.bfloat16 if mxu_bf16 else x_nhwc.dtype

    if downsample:
        hp, wp = h // 2, w // 2
        if (h % 2) or (w % 2):
            x_nhwc = x_nhwc[:, :2 * hp, :2 * wp, :]            # avg_pool2d drops odd edges
        k = 2 * c
        # Fold the W-pair pooling + the 1/4 average into conv1's weight (exact: *0.25).
        w1_eff = jnp.concatenate([w1, w1], axis=0) * 0.25
        if wp > 0 and wp % 8 == 0:
            # Primary path: pure reshape, H-pair pooling happens in-kernel (no extra HBM pass).
            pool_pairs = True
            lhs = x_nhwc.reshape(n * hp, 2 * wp, 2 * c)
            rows, s_in, s_out = n * hp, 2 * wp, wp
        else:
            # Fallback for misaligned Wp: one cheap wrapper-side H-pair sum, then flat matmul.
            pool_pairs = False
            xs = x_nhwc.reshape(n, hp, 2, 2 * wp * c).sum(axis=2)
            lhs = xs.reshape(n * hp * wp, 2 * c)
            rows, s_in, s_out = n * hp * wp, 1, 1
        out_h, out_w = hp, wp
    else:
        k = c
        w1_eff = w1
        pool_pairs = False
        lhs = x_nhwc.reshape(n * h * w, c)
        rows, s_in, s_out = n * h * w, 1, 1
        out_h, out_w = h, w

    pixels = n * out_h * out_w

    # ---- host-side dtype prep (fuses with the transpose under jit); weights cast ONCE ----
    lhs = lhs.astype(cdt)
    w1_eff = w1_eff.astype(cdt)
    b1_2d = b1.reshape(1, c).astype(jnp.float32)
    w2_p = jnp.zeros((c, out_pad), cdt).at[:, :out_dim].set(w2.astype(cdt))
    b2_p = jnp.zeros((1, out_pad), jnp.float32).at[0, :out_dim].set(b2.astype(jnp.float32))

    # ---- VMEM accounting (streamed blocks double-buffered + resident weights + intermediates) ----
    in_item = jnp.dtype(cdt).itemsize
    out_item = jnp.dtype(orig_dtype).itemsize
    if lhs.ndim == 3:
        in_bytes_t = _rup(s_in, 8) * _rup(k, 128) * in_item
    else:
        in_bytes_t = _rup(k, 128) * in_item
    out_bytes_t = s_out * out_pad * out_item
    inter_bytes_t = s_out * (_rup(k, 128) + _rup(c, 128) + out_pad) * 4
    per_t = 2 * (in_bytes_t + out_bytes_t) + inter_bytes_t
    resident = 2 * ((_rup(k, 8) * _rup(c, 128) + _rup(c, 8) * out_pad) * in_item
                    + (8 * _rup(c, 128) + 8 * out_pad) * 4)

    try:
        vmem_cap = int(pltpu.get_tpu_info().vmem_capacity_bytes)
    except Exception:                                           # be conservative (v7x-safe)
        vmem_cap = 64 * 1024 * 1024
    budget = max(8 << 20, vmem_cap // 2 - (8 << 20))            # ~56 MiB v5e/v6e, ~24 MiB v7x

    t = max(1, min((budget - resident) // max(per_t, 1),
                   rows,
                   max(1, target_pixels_per_tile // s_out)))
    if rows > 1:                                                # keep >=2 grid steps (v7x 2nd TC)
        t = min(t, pl.cdiv(rows, 2))
    if lhs.ndim == 2:                                           # (8,128) rule on the pixel tile
        if t < rows:
            t = max(8, (t // 8) * 8)
        t = min(t, rows)
    grid = (pl.cdiv(rows, t),)
    out_rows_per_tile = t * s_out

    needed = resident + per_t * t + (4 << 20)
    vmem_limit = int(min(vmem_cap - (8 << 20), max(32 << 20, needed + needed // 2)))

    if lhs.ndim == 3:
        lhs_spec = pl.BlockSpec((t, s_in, k), lambda i: (i, 0, 0))
    else:
        lhs_spec = pl.BlockSpec((t, k), lambda i: (i, 0))

    cost = pl.CostEstimate(
        flops=int(2 * pixels * (k * c + c * out_pad)),
        transcendentals=0,
        bytes_accessed=int(lhs.size * in_item + pixels * out_pad * out_item
                           + (k * c + c * out_pad) * in_item + (c + out_pad) * 4))

    kernel = functools.partial(_projector_kernel, pool_pairs=pool_pairs)

    out_flat = pl.pallas_call(
        kernel,
        out_shape=jax.ShapeDtypeStruct((pixels, out_pad), orig_dtype),
        grid=grid,
        in_specs=[
            lhs_spec,                                            # pixel tile (streamed)
            pl.BlockSpec((k, c), lambda i: (0, 0)),              # conv1 weight (+pool fold), resident
            pl.BlockSpec((1, c), lambda i: (0, 0)),              # conv1 bias (f32)
            pl.BlockSpec((c, out_pad), lambda i: (0, 0)),        # conv2 weight (lane-padded)
            pl.BlockSpec((1, out_pad), lambda i: (0, 0)),        # conv2 bias (lane-padded, f32)
        ],
        out_specs=pl.BlockSpec((out_rows_per_tile, out_pad), lambda i: (i, 0)),
        compiler_params=pltpu.CompilerParams(
            dimension_semantics=("parallel",),
            vmem_limit_bytes=vmem_limit),
        cost_estimate=cost,
    )(lhs, w1_eff, b1_2d, w2_p, b2_p)

    out = out_flat[:, :out_dim].reshape(n, out_h, out_w, out_dim)
    if channels_last:
        return out
    # TODO(synk): this final transpose is a full output-size HBM copy; skip it when the
    # consumer accepts NHWC.
    return jnp.transpose(out, (0, 3, 1, 2))                     # (N, out_dim, Hp, Wp)


def init_projector_params(key, in_dim, out_dim):
    """Deterministic synthetic params matching nn.Conv2d(k=1) shapes.

    PyTorch conv weight is (out, in, 1, 1); we store the matmul-ready (in, out) form."""
    k1, k2, k3, k4 = jax.random.split(key, 4)
    w1 = jax.random.normal(k1, (in_dim, in_dim), jnp.float32) * 0.1   # conv1.weight.T
    b1 = jax.random.normal(k2, (in_dim,), jnp.float32) * 0.1          # conv1.bias
    w2 = jax.random.normal(k3, (in_dim, out_dim), jnp.float32) * 0.1  # conv2.weight.T
    b2 = jax.random.normal(k4, (out_dim,), jnp.float32) * 0.1         # conv2.bias
    return {"w1": w1, "b1": b1, "w2": w2, "b2": b2}


def _reference_forward(x_nchw, params, downsample=True):
    """Pure-JAX reference matching the PyTorch module semantics."""
    x = x_nchw
    if downsample:
        n, c, h, w = x.shape
        x = x.reshape(n, c, h // 2, 2, w // 2, 2).mean(axis=(3, 5))
    h1 = jnp.einsum("nchw,cd->ndhw", x, params["w1"]) + params["b1"][None, :, None, None]
    h1 = jnp.maximum(h1, 0.0)
    y = jnp.einsum("nchw,cd->ndhw", h1, params["w2"]) + params["b2"][None, :, None, None]
    return y


if __name__ == "__main__":
    in_dim, out_dim = 4, 8
    n, h, w = 2, 16, 16

    key = jax.random.PRNGKey(0)
    kx, kp = jax.random.split(key)
    x = jax.random.normal(kx, (n, in_dim, h, w), jnp.float32)     # NCHW, like PyTorch
    params = init_projector_params(kp, in_dim, out_dim)

    fwd = jax.jit(functools.partial(projector_forward, downsample=True))
    out = jax.block_until_ready(fwd(x, params))

    ref = _reference_forward(x, params, downsample=True)
    assert out.shape == (n, out_dim, h // 2, w // 2), out.shape
    assert jnp.allclose(out, ref, atol=1e-5, rtol=1e-5), float(jnp.max(jnp.abs(out - ref)))

    print("KERNEL_OK")
</pallas_src>

<mosaic_0001>
module attributes {stable_mosaic.version = 11 : i64} {
  func.func @_projector_kernel(%arg0: i32, %arg1: memref<8x16x8xf32, #tpu.memory_space<vmem>>, %arg2: memref<8x4xf32, #tpu.memory_space<vmem>>, %arg3: memref<1x4xf32, #tpu.memory_space<vmem>>, %arg4: memref<4x128xf32, #tpu.memory_space<vmem>>, %arg5: memref<1x128xf32, #tpu.memory_space<vmem>>, %arg6: memref<64x128xf32, #tpu.memory_space<vmem>>) attributes {dimension_semantics = [#tpu.dimension_semantics<parallel>], iteration_bounds = array<i64: 2>, scalar_prefetch = 0 : i64, scratch_operands = 0 : i64, tpu.core_type = #tpu.core_type<tc>, window_params = [{transform_indices = @transform_0, window_bounds = array<i64: 8, 16, 8>}, {pipeline_mode = #tpu.pipeline_mode<synchronous>, transform_indices = @transform_1, window_bounds = array<i64: 8, 4>}, {pipeline_mode = #tpu.pipeline_mode<synchronous>, transform_indices = @transform_2, window_bounds = array<i64: 1, 4>}, {pipeline_mode = #tpu.pipeline_mode<synchronous>, transform_indices = @transform_3, window_bounds = array<i64: 4, 128>}, {pipeline_mode = #tpu.pipeline_mode<synchronous>, transform_indices = @transform_4, window_bounds = array<i64: 1, 128>}, {transform_indices = @transform_5, window_bounds = array<i64: 64, 128>}]} {
    %c0 = arith.constant 0 : index
    %c0_0 = arith.constant 0 : index
    %c0_1 = arith.constant 0 : index
    %0 = vector.load %arg1[%c0, %c0_0, %c0_1] : memref<8x16x8xf32, #tpu.memory_space<vmem>>, vector<8x16x8xf32>
    %1 = vector.extract_strided_slice %0 {offsets = [0, 0, 0], sizes = [8, 8, 8], strides = [1, 1, 1]} : vector<8x16x8xf32> to vector<8x8x8xf32>
    %2 = vector.extract_strided_slice %0 {offsets = [0, 8, 0], sizes = [8, 8, 8], strides = [1, 1, 1]} : vector<8x16x8xf32> to vector<8x8x8xf32>
    %3 = arith.addf %1, %2 : vector<8x8x8xf32>
    %4 = vector.shape_cast %3 : vector<8x8x8xf32> to vector<64x8xf32>
    %c0_2 = arith.constant 0 : index
    %c0_3 = arith.constant 0 : index
    %5 = vector.load %arg2[%c0_2, %c0_3] : memref<8x4xf32, #tpu.memory_space<vmem>>, vector<8x4xf32>
    %cst = arith.constant dense<0.000000e+00> : vector<64x4xf32>
    %6 = tpu.matmul %4, %5, %cst {dimension_numbers = #tpu.dot_dimension_numbers<[1], [0], [0], [1], [0, 0, 1, 1], [], []>} : vector<64x8xf32>, vector<8x4xf32>, vector<64x4xf32> -> vector<64x4xf32>
    %c0_4 = arith.constant 0 : index
    %c0_5 = arith.constant 0 : index
    %7 = vector.load %arg3[%c0_4, %c0_5] : memref<1x4xf32, #tpu.memory_space<vmem>>, vector<1x4xf32>
    %8 = vector.broadcast %7 : vector<1x4xf32> to vector<64x4xf32>
    %9 = arith.addf %6, %8 : vector<64x4xf32>
    %cst_6 = arith.constant 0.000000e+00 : f32
    %10 = vector.broadcast %cst_6 : f32 to vector<64x4xf32>
    %11 = arith.maximumf %9, %10 : vector<64x4xf32>
    %c0_7 = arith.constant 0 : index
    %c0_8 = arith.constant 0 : index
    %12 = vector.load %arg4[%c0_7, %c0_8] : memref<4x128xf32, #tpu.memory_space<vmem>>, vector<4x128xf32>
    %cst_9 = arith.constant dense<0.000000e+00> : vector<64x128xf32>
    %13 = tpu.matmul %11, %12, %cst_9 {dimension_numbers = #tpu.dot_dimension_numbers<[1], [0], [0], [1], [0, 0, 1, 1], [], []>} : vector<64x4xf32>, vector<4x128xf32>, vector<64x128xf32> -> vector<64x128xf32>
    %c0_10 = arith.constant 0 : index
    %c0_11 = arith.constant 0 : index
    %14 = vector.load %arg5[%c0_10, %c0_11] : memref<1x128xf32, #tpu.memory_space<vmem>>, vector<1x128xf32>
    %15 = vector.broadcast %14 : vector<1x128xf32> to vector<64x128xf32>
    %16 = arith.addf %13, %15 : vector<64x128xf32>
    %c0_12 = arith.constant 0 : index
    %c0_13 = arith.constant 0 : index
    %17 = vector.load %arg6[%c0_12, %c0_13] : memref<64x128xf32, #tpu.memory_space<vmem>>, vector<64x128xf32>
    tpu.vector_store %arg6[%c0_12, %c0_13], %16 {strides = array<i32>} : memref<64x128xf32, #tpu.memory_space<vmem>>, vector<64x128xf32>,
    return
  }
  func.func @transform_0(%arg0: i32) -> (i32, i32, i32) {
    %c0_i32 = arith.constant 0 : i32
    %c0_i32_0 = arith.constant 0 : i32
    %c0_i32_1 = arith.constant 0 : i32
    return %arg0, %c0_i32, %c0_i32_0 : i32, i32, i32
  }
  func.func @transform_1(%arg0: i32) -> (i32, i32) {
    %c0_i32 = arith.constant 0 : i32
    %c0_i32_0 = arith.constant 0 : i32
    %c0_i32_1 = arith.constant 0 : i32
    return %c0_i32, %c0_i32_0 : i32, i32
  }
  func.func @transform_2(%arg0: i32) -> (i32, i32) {
    %c0_i32 = arith.constant 0 : i32
    %c0_i32_0 = arith.constant 0 : i32
    %c0_i32_1 = arith.constant 0 : i32
    return %c0_i32, %c0_i32_0 : i32, i32
  }
  func.func @transform_3(%arg0: i32) -> (i32, i32) {
    %c0_i32 = arith.constant 0 : i32
    %c0_i32_0 = arith.constant 0 : i32
    %c0_i32_1 = arith.constant 0 : i32
    return %c0_i32, %c0_i32_0 : i32, i32
  }
  func.func @transform_4(%arg0: i32) -> (i32, i32) {
    %c0_i32 = arith.constant 0 : i32
    %c0_i32_0 = arith.constant 0 : i32
    %c0_i32_1 = arith.constant 0 : i32
    return %c0_i32, %c0_i32_0 : i32, i32
  }
  func.func @transform_5(%arg0: i32) -> (i32, i32) {
    %c0_i32 = arith.constant 0 : i32
    %c0_i32_0 = arith.constant 0 : i32
    return %arg0, %c0_i32 : i32, i32
  }
}

</mosaic_0001>

<llo_original>
// kernel: projector_forward.1
$region0: #{projector_forward.1}
  #allocation0 [shape = 'u32[]', space=smem, size = 0x4, offset = 0x4, fixed_abs, tag = 'smem constant byte address 0x4 - core index']
  #allocation1 [shape = 'u32[144,128]{1,0:T(1,128)}', space=vmem, size = 0x12000, scoped, tag = 'internal scratch']
  %s0 = inlined_call_operand.vmem [shape: f32[16,16,8], index: 0, kind: input, shape index: {}]
  %s1 = inlined_call_operand.vmem [shape: f32[8,4], index: 1, kind: input, shape index: {}]
  %s2 = inlined_call_operand.vmem [shape: f32[1,4], index: 2, kind: input, shape index: {}]
  %s3 = inlined_call_operand.vmem [shape: f32[4,128], index: 3, kind: input, shape index: {}]
  %s4 = inlined_call_operand.vmem [shape: f32[1,128], index: 4, kind: input, shape index: {}]
  %s5 = inlined_call_operand.vmem [shape: f32[128,128], index: 5, kind: output, shape index: {}]
  %s6 = sld [smem:[#allocation0]]
  $region53: #{projector_forward.1} parent=0
    _
  %s8 = ssub.s32 1, %s6
  %s9 = scalar_select 0, %s8, %s6
  loop: start=0, step=1, limit=4
  $region2: #{projector_forward.1} parent=0 // loop_pre_header
    _
  $region3: #{projector_forward.1} parent=0 // loop_header
    %s11 = sphi 0, %s15
    %p12 = scmp.ge.s32.totalorder %s11, 4
    %s21 = sphi 0, %s23
    %s24 = sphi 0, %s21
    %s25 = sphi 0, %s24
    %s41 = sphi 0, %s25
    %s45 = sphi 0, %s45
    %s47 = sphi 0, %s45
    %s48 = sphi 0, %s47
    %s62 = sphi 0, %s48
    %s66 = sphi 0, %s66
    %s68 = sphi 0, %s66
    %s69 = sphi 0, %s68
    %s83 = sphi 0, %s69
    %s87 = sphi 0, %s87
    %s89 = sphi 0, %s87
    %s90 = sphi 0, %s89
    %s104 = sphi 0, %s90
    %s108 = sphi 0, %s108
    %s110 = sphi 0, %s108
    %s111 = sphi 0, %s110
    %s125 = sphi 0, %s111
    %s131 = sphi 0, %s133
    %s134 = sphi 0, %s131
    %s135 = sphi 0, %s134
    %s151 = sphi 0, %s135
  $region4: #{projector_forward.1} parent=0 // loop_header_branch
    %14 = sbr.rel (%p12) target = $region8
  $region5: #{projector_forward.1} parent=0 // loop_body
    %s16 = ssub.s32 %s11, 1
    %s17 = ssub.s32 %s11, 2
    %s18 = sadd.s32 %s11, 1
    %s19 = ssub.s32 %s11, %s18
    %p20 = scmp.eq.s32.totalorder %s19, 0
    %s22 = sadd.s32 %s21, 1
    %s23 = scalar_select %p20, %s21, %s22
    %p26 = pneg %p20
    %p27 = scmp.eq.s32.totalorder %s11, 1
    %p28 = por %p26, %p27
    %p29 = scmp.ne.s32.totalorder %s21, %s24
    %p30 = scmp.eq.s32.totalorder %s11, 0
    %p31 = por %p29, %p30
    %p32 = scmp.ne.s32.totalorder %s21, %s24
    %p33 = scmp.eq.s32.totalorder %s16, 1
    %p34 = por %p32, %p33
    %p35 = scmp.ne.s32.totalorder %s24, %s25
    %p36 = scmp.eq.s32.totalorder %s16, 0
    %p37 = por %p35, %p36
    %p38 = scmp.ne.s32.totalorder %s24, %s25
    %p39 = scmp.eq.s32.totalorder %s17, 1
    %p40 = por %p38, %p39
    %p42 = scmp.ne.s32.totalorder %s25, %s41
    %p43 = scmp.eq.s32.totalorder %s17, 0
    %p44 = por %p42, %p43
    %s46 = sadd.s32 %s45, 1
    %p49 = scmp.eq.s32.totalorder %s11, 1
    %p50 = scmp.ne.s32.totalorder %s45, %s47
    %p51 = scmp.eq.s32.totalorder %s11, 0
    %p52 = por %p50, %p51
    %p53 = scmp.ne.s32.totalorder %s45, %s47
    %p54 = scmp.eq.s32.totalorder %s16, 1
    %p55 = por %p53, %p54
    %p56 = scmp.ne.s32.totalorder %s47, %s48
    %p57 = scmp.eq.s32.totalorder %s16, 0
    %p58 = por %p56, %p57
    %p59 = scmp.ne.s32.totalorder %s47, %s48
    %p60 = scmp.eq.s32.totalorder %s17, 1
    %p61 = por %p59, %p60
    %p63 = scmp.ne.s32.totalorder %s48, %s62
    %p64 = scmp.eq.s32.totalorder %s17, 0
    %p65 = por %p63, %p64
    %s67 = sadd.s32 %s66, 1
    %p70 = scmp.eq.s32.totalorder %s11, 1
    %p71 = scmp.ne.s32.totalorder %s66, %s68
    %p72 = scmp.eq.s32.totalorder %s11, 0
    %p73 = por %p71, %p72
    %p74 = scmp.ne.s32.totalorder %s66, %s68
    %p75 = scmp.eq.s32.totalorder %s16, 1
    %p76 = por %p74, %p75
    %p77 = scmp.ne.s32.totalorder %s68, %s69
    %p78 = scmp.eq.s32.totalorder %s16, 0
    %p79 = por %p77, %p78
    %p80 = scmp.ne.s32.totalorder %s68, %s69
    %p81 = scmp.eq.s32.totalorder %s17, 1
    %p82 = por %p80, %p81
    %p84 = scmp.ne.s32.totalorder %s69, %s83
    %p85 = scmp.eq.s32.totalorder %s17, 0
    %p86 = por %p84, %p85
    %s88 = sadd.s32 %s87, 1
    %p91 = scmp.eq.s32.totalorder %s11, 1
    %p92 = scmp.ne.s32.totalorder %s87, %s89
    %p93 = scmp.eq.s32.totalorder %s11, 0
    %p94 = por %p92, %p93
    %p95 = scmp.ne.s32.totalorder %s87, %s89
    %p96 = scmp.eq.s32.totalorder %s16, 1
    %p97 = por %p95, %p96
    %p98 = scmp.ne.s32.totalorder %s89, %s90
    %p99 = scmp.eq.s32.totalorder %s16, 0
    %p100 = por %p98, %p99
    %p101 = scmp.ne.s32.totalorder %s89, %s90
    %p102 = scmp.eq.s32.totalorder %s17, 1
    %p103 = por %p101, %p102
    %p105 = scmp.ne.s32.totalorder %s90, %s104
    %p106 = scmp.eq.s32.totalorder %s17, 0
    %p107 = por %p105, %p106
    %s109 = sadd.s32 %s108, 1
    %p112 = scmp.eq.s32.totalorder %s11, 1
    %p113 = scmp.ne.s32.totalorder %s108, %s110
    %p114 = scmp.eq.s32.totalorder %s11, 0
    %p115 = por %p113, %p114
    %p116 = scmp.ne.s32.totalorder %s108, %s110
    %p117 = scmp.eq.s32.totalorder %s16, 1
    %p118 = por %p116, %p117
    %p119 = scmp.ne.s32.totalorder %s110, %s111
    %p120 = scmp.eq.s32.totalorder %s16, 0
    %p121 = por %p119, %p120
    %p122 = scmp.ne.s32.totalorder %s110, %s111
    %p123 = scmp.eq.s32.totalorder %s17, 1
    %p124 = por %p122, %p123
    %p126 = scmp.ne.s32.totalorder %s111, %s125
    %p127 = scmp.eq.s32.totalorder %s17, 0
    %p128 = por %p126, %p127
    %s129 = ssub.s32 %s11, %s18
    %p130 = scmp.eq.s32.totalorder %s129, 0
    %s132 = sadd.s32 %s131, 1
    %s133 = scalar_select %p130, %s131, %s132
    %p136 = pneg %p130
    %p137 = scmp.eq.s32.totalorder %s11, 1
    %p138 = por %p136, %p137
    %p139 = scmp.ne.s32.totalorder %s131, %s134
    %p140 = scmp.eq.s32.totalorder %s11, 0
    %p141 = por %p139, %p140
    %p142 = scmp.ne.s32.totalorder %s131, %s134
    %p143 = scmp.eq.s32.totalorder %s16, 1
    %p144 = por %p142, %p143
    %p145 = scmp.ne.s32.totalorder %s134, %s135
    %p146 = scmp.eq.s32.totalorder %s16, 0
    %p147 = por %p145, %p146
    %p148 = scmp.ne.s32.totalorder %s134, %s135
    %p149 = scmp.eq.s32.totalorder %s17, 1
    %p150 = por %p148, %p149
    %p152 = scmp.ne.s32.totalorder %s135, %s151
    %p153 = scmp.eq.s32.totalorder %s17, 0
    %p154 = por %p152, %p153
    %p155 = scmp.le.s32.totalorder 1, %s11
    %p156 = scmp.lt.s32.totalorder %s11, 3
    %p157 = pnand %p155, %p156
    %p158 = pneg %p157
    // Predicated region
    $region9: #{projector_forward.1} parent=5 // pred_check
      _
    $region10: #{projector_forward.1} parent=5 // pred_check_branch
      %160 = sbr.rel (%p157) target = $region12
    $region11: #{projector_forward.1} parent=5 // pred_region
      %s161 = ssub.s32 %s11, 1
      // Predicated region
      $region13: #{projector_forward.1} parent=11 // pred_check
        %p162 = pneg %p58
      $region14: #{projector_forward.1} parent=11 // pred_check_branch
        %164 = sbr.rel (%p162) target = $region16
      $region15: #{projector_forward.1} parent=11 // pred_region
        _
      $region16: #{projector_forward.1} parent=11 // pred_fallthru
        _
      // Predicated region
      $region17: #{projector_forward.1} parent=11 // pred_check
        %p165 = pneg %p79
      $region18: #{projector_forward.1} parent=11 // pred_check_branch
        %167 = sbr.rel (%p165) target = $region20
      $region19: #{projector_forward.1} parent=11 // pred_region
        _
      $region20: #{projector_forward.1} parent=11 // pred_fallthru
        _
      // Predicated region
      $region21: #{projector_forward.1} parent=11 // pred_check
        %p168 = pneg %p100
      $region22: #{projector_forward.1} parent=11 // pred_check_branch
        %170 = sbr.rel (%p168) target = $region24
      $region23: #{projector_forward.1} parent=11 // pred_region
        _
      $region24: #{projector_forward.1} parent=11 // pred_fallthru
        _
      // Predicated region
      $region25: #{projector_forward.1} parent=11 // pred_check
        %p171 = pneg %p121
      $region26: #{projector_forward.1} parent=11 // pred_check_branch
        %173 = sbr.rel (%p171) target = $region28
      $region27: #{projector_forward.1} parent=11 // pred_region
        _
      $region28: #{projector_forward.1} parent=11 // pred_fallthru
        _
    $region12: #{projector_forward.1} parent=5 // pred_fallthru
      _
    %p174 = scmp.lt.s32.totalorder %s11, 2
    // Predicated region
    $region29: #{projector_forward.1} parent=5 // pred_check
      %p175 = pneg %p174
    $region30: #{projector_forward.1} parent=5 // pred_check_branch
      %177 = sbr.rel (%p175) target = $region32
    $region31: #{projector_forward.1} parent=5 // pred_region
      // Predicated region
      $region33: #{projector_forward.1} parent=31 // pred_check
        %p178 = pneg %p31
      $region34: #{projector_forward.1} parent=31 // pred_check_branch
        %180 = sbr.rel (%p178) target = $region36
      $region35: #{projector_forward.1} parent=31 // pred_region
        %s181 = smul.u32 8, %s11
        %p182 = scmp.lt.s32.totalorder %s181, 15
        %s183 = scalar_select %p182, %s181, 15
        %s184 = smul.addr %s183, 2
        %s185 = smul.addr %s184, 8
        %s186 = scalar_lea.vmem %s0, %s185
        %s187 = smul.u32 8, %s11
      $region36: #{projector_forward.1} parent=31 // pred_fallthru
        _
    $region32: #{projector_forward.1} parent=5 // pred_fallthru
      _
    %p188 = scmp.le.s32.totalorder 1, %s11
    %p189 = scmp.lt.s32.totalorder %s11, 3
    %p190 = pnand %p188, %p189
    %p191 = pneg %p190
    // Predicated region
    $region37: #{projector_forward.1} parent=5 // pred_check
      _
    $region38: #{projector_forward.1} parent=5 // pred_check_branch
      %193 = sbr.rel (%p190) target = $region40
    $region39: #{projector_forward.1} parent=5 // pred_region
      %s194 = ssub.s32 %s11, 1
      %s195 = smul.u32 8, %s16
      %p196 = scmp.lt.s32.totalorder %s195, 15
      %s197 = scalar_select %p196, %s195, 15
      %s198 = smul.addr %s197, 2
      %s199 = smul.addr %s198, 8
      %s200 = scalar_lea.vmem %s0, %s199
      %p201 = pneg %p37
      %p202 = pneg %p34
      %p203 = pneg %p58
      %p204 = pneg %p55
      %p205 = pneg %p79
      %p206 = pneg %p76
      %p207 = pneg %p100
      %p208 = pneg %p97
      %p209 = pneg %p121
      %p210 = pneg %p118
      %p211 = pneg %p147
      %p212 = pneg %p144
      %s213 = smul.u32 8, %s16
      %p214 = scmp.lt.s32.totalorder %s213, 15
      %s215 = scalar_select %p214, %s213, 15
      %s216 = smul.addr %s215, 8
      %s217 = scalar_lea.vmem %s5, %s216
      %s218 = smul.u32 8, %s16
      %p219 = scmp.lt.s32.totalorder %s218, 15
      %s220 = scalar_select %p219, %s218, 15
      %s221 = smul.addr %s220, 2
      %s222 = smul.addr %s221, 8
      %s223 = scalar_lea.vmem %s0, %s222
      %s224 = smul.u32 8, %s16
      %s225 = smul.u32 8, %s16
      %p226 = scmp.lt.s32.totalorder %s225, 15
      %s227 = scalar_select %p226, %s225, 15
      %s228 = smul.addr %s227, 8
      %s229 = scalar_lea.vmem %s5, %s228
      %s230 = smul.u32 8, %s16
      %v231 = vld [vmem:[%s223] sm:$0xff]
      %v232 = vld [vmem:[%s223 + $0x8] sm:$0xff]
      %v233 = vld [vmem:[%s223 + $0x10] sm:$0xff]
      %v234 = vld [vmem:[%s223 + $0x18] sm:$0xff]
      %v235 = vld [vmem:[%s223 + $0x20] sm:$0xff]
      %v236 = vld [vmem:[%s223 + $0x28] sm:$0xff]
      %v237 = vld [vmem:[%s223 + $0x30] sm:$0xff]
      %v238 = vld [vmem:[%s223 + $0x38] sm:$0xff]
      %v239 = vld [vmem:[%s223 + $0x40] sm:$0xff]
      %v240 = vld [vmem:[%s223 + $0x48] sm:$0xff]
      %v241 = vld [vmem:[%s223 + $0x50] sm:$0xff]
      %v242 = vld [vmem:[%s223 + $0x58] sm:$0xff]
      %v243 = vld [vmem:[%s223 + $0x60] sm:$0xff]
      %v244 = vld [vmem:[%s223 + $0x68] sm:$0xff]
      %v245 = vld [vmem:[%s223 + $0x70] sm:$0xff]
      %v246 = vld [vmem:[%s223 + $0x78] sm:$0xff]
      %v247 = vadd.f32 %v231, %v232
      %v248 = vadd.f32 %v233, %v234
      %v249 = vadd.f32 %v235, %v236
      %v250 = vadd.f32 %v237, %v238
      %v251 = vadd.f32 %v239, %v240
      %v252 = vadd.f32 %v241, %v242
      %v253 = vadd.f32 %v243, %v244
      %v254 = vadd.f32 %v245, %v246
      %v255 = vld [vmem:[%s1] sm:$0xff]
      %v256 = vld [vmem:[%s2] sm:$0x1]
      %v258 = vlaneseq
      %v259 = vshrl.u32 %v258, 7
      %v260 = vsub.s32 0, %v259
      %v261 = vrot.slane %v256, %v260
      %vm263 = vcmask 64512
      %v265 = vsel %vm263, %v247, 0
      %v268 = vsel %vm263, %v248, 0
      %v271 = vsel %vm263, %v249, 0
      %v274 = vsel %vm263, %v250, 0
      %v277 = vsel %vm263, %v251, 0
      %v280 = vsel %vm263, %v252, 0
      %v283 = vsel %vm263, %v253, 0
      %v286 = vsel %vm263, %v254, 0
      %288 = vmatprep.subr.mxu0 0.0
      %289 = vmatpush1.msra.mxu0 0.0
      %290 = vmatprep.subr.mxu0 0.0
      %291 = vmatpush1.msra.mxu0 0.0
      %292 = vmatprep.subr.mxu0 0.0
      %293 = vmatpush1.msra.mxu0 0.0
      %294 = vmatprep.subr.mxu0 0.0
      %295 = vmatpush1.msra.mxu0 0.0
      %296 = vmatprep.subr.mxu0 0.0
      %297 = vmatpush1.msra.mxu0 0.0
      %298 = vmatprep.subr.mxu0 0.0
      %299 = vmatpush1.msra.mxu0 0.0
      %300 = vmatprep.subr.mxu0 0.0
      %301 = vmatpush1.msra.mxu0 0.0
      %302 = vmatprep.subr.mxu0 0.0
      %303 = vmatpush1.msra.mxu0 0.0
      %304 = vmatprep.subr.mxu0 0.0
      %305 = vmatpush1.msra.mxu0 0.0
      %306 = vmatprep.subr.mxu0 0.0
      %307 = vmatpush1.msra.mxu0 0.0
      %308 = vmatprep.subr.mxu0 0.0
      %309 = vmatpush1.msra.mxu0 0.0
      %310 = vmatprep.subr.mxu0 0.0
      %311 = vmatpush1.msra.mxu0 0.0
      %312 = vmatprep.subr.mxu0 0.0
      %313 = vmatpush1.msra.mxu0 0.0
      %314 = vmatprep.subr.mxu0 0.0
      %315 = vmatpush1.msra.mxu0 0.0
      %316 = vmatprep.subr.mxu0 0.0
      %317 = vmatpush1.msra.mxu0 0.0
      %318 = vmatprep.subr.mxu0 0.0
      %319 = vmatpush1.msra.mxu0 %v255
      %320 = vmatprep.subr.mxu0 0.0
      %321 = vmatpush2.msra.mxu0 0.0
      %322 = vmatprep.subr.mxu0 0.0
      %323 = vmatpush2.msra.mxu0 0.0
      %324 = vmatprep.subr.mxu0 0.0
      %325 = vmatpush2.msra.mxu0 0.0
      %326 = vmatprep.subr.mxu0 0.0
      %327 = vmatpush2.msra.mxu0 0.0
      %328 = vmatprep.subr.mxu0 0.0
      %329 = vmatpush2.msra.mxu0 0.0
      %330 = vmatprep.subr.mxu0 0.0
      %331 = vmatpush2.msra.mxu0 0.0
      %332 = vmatprep.subr.mxu0 0.0
      %333 = vmatpush2.msra.mxu0 0.0
      %334 = vmatprep.subr.mxu0 0.0
      %335 = vmatpush2.msra.mxu0 0.0
      %336 = vmatprep.subr.mxu0 0.0
      %337 = vmatpush2.msra.mxu0 0.0
      %338 = vmatprep.subr.mxu0 0.0
      %339 = vmatpush2.msra.mxu0 0.0
      %340 = vmatprep.subr.mxu0 0.0
      %341 = vmatpush2.msra.mxu0 0.0
      %342 = vmatprep.subr.mxu0 0.0
      %343 = vmatpush2.msra.mxu0 0.0
      %344 = vmatprep.subr.mxu0 0.0
      %345 = vmatpush2.msra.mxu0 0.0
      %346 = vmatprep.subr.mxu0 0.0
      %347 = vmatpush2.msra.mxu0 0.0
      %348 = vmatprep.subr.mxu0 0.0
      %349 = vmatpush2.msra.mxu0 0.0
      %350 = vmatprep.subr.mxu0 0.0
      %351 = vmatpush2.msra.mxu0 0.0
      %352 = vmatprep.mubr.f32.mxu0 0.0
      %353 = vmatmul.mubr.f32.gmra.mxu0 %v265
      %v354 = vpop.f32.mrf.mxu0
      %v355 = vadd.f32 %v261, %v354
      %v356 = vpop.f32.mrf.mxu0
      %357 = vmatprep.mubr.f32.mxu0 0.0
      %358 = vmatmul.mubr.f32.gmra.mxu0 %v268
      %v359 = vpop.f32.mrf.mxu0
      %v360 = vadd.f32 %v261, %v359
      %v361 = vpop.f32.mrf.mxu0
      %362 = vmatprep.mubr.f32.mxu0 0.0
      %363 = vmatmul.mubr.f32.gmra.mxu0 %v271
      %v364 = vpop.f32.mrf.mxu0
      %v365 = vadd.f32 %v261, %v364
      %v366 = vpop.f32.mrf.mxu0
      %367 = vmatprep.mubr.f32.mxu0 0.0
      %368 = vmatmul.mubr.f32.gmra.mxu0 %v274
      %v369 = vpop.f32.mrf.mxu0
      %v370 = vadd.f32 %v261, %v369
      %v371 = vpop.f32.mrf.mxu0
      %372 = vmatprep.mubr.f32.mxu0 0.0
      %373 = vmatmul.mubr.f32.gmra.mxu0 %v277
      %v374 = vpop.f32.mrf.mxu0
      %v375 = vadd.f32 %v261, %v374
      %v376 = vpop.f32.mrf.mxu0
      %377 = vmatprep.mubr.f32.mxu0 0.0
      %378 = vmatmul.mubr.f32.gmra.mxu0 %v280
      %v379 = vpop.f32.mrf.mxu0
      %v380 = vadd.f32 %v261, %v379
      %v381 = vpop.f32.mrf.mxu0
      %382 = vmatprep.mubr.f32.mxu0 0.0
      %383 = vmatmul.mubr.f32.gmra.mxu0 %v283
      %v384 = vpop.f32.mrf.mxu0
      %v385 = vadd.f32 %v261, %v384
      %v386 = vpop.f32.mrf.mxu0
      %387 = vmatprep.mubr.f32.mxu0 0.0
      %388 = vmatmul.mubr.f32.gmra.mxu0 %v286
      %v389 = vpop.f32.mrf.mxu0
      %v390 = vadd.f32 %v261, %v389
      %v391 = vpop.f32.mrf.mxu0
      %392 = vdwg.mxu0
      %v393 = vmax.f32 %v355, 0.0
      %v394 = vmax.f32 %v360, 0.0
      %v395 = vmax.f32 %v365, 0.0
      %v396 = vmax.f32 %v370, 0.0
      %v397 = vmax.f32 %v375, 0.0
      %v398 = vmax.f32 %v380, 0.0
      %v399 = vmax.f32 %v385, 0.0
      %v400 = vmax.f32 %v390, 0.0
      %v401 = vld [vmem:[%s3] sm:$0xf]
      %v402 = vld [vmem:[%s4] sm:$0x1]
      %v404 = vlaneseq
      %v405 = vshrl.u32 %v404, 7
      %v406 = vsub.s32 0, %v405
      %v407 = vrot.slane %v402, %v406
      %vm409 = vcmask 31744
      %v411 = vsel %vm409, %v393, 0
      %v414 = vsel %vm409, %v394, 0
      %v417 = vsel %vm409, %v395, 0
      %v420 = vsel %vm409, %v396, 0
      %v423 = vsel %vm409, %v397, 0
      %v426 = vsel %vm409, %v398, 0
      %v429 = vsel %vm409, %v399, 0
      %v432 = vsel %vm409, %v400, 0
      %vm434 = vcmask 1043456
      %v436 = vsel %vm434, %v401, 0
      %438 = vmatprep.subr.mxu0 0.0
      %439 = vmatpush1.msra.mxu0 0.0
      %440 = vmatprep.subr.mxu0 0.0
      %441 = vmatpush1.msra.mxu0 0.0
      %442 = vmatprep.subr.mxu0 0.0
      %443 = vmatpush1.msra.mxu0 0.0
      %444 = vmatprep.subr.mxu0 0.0
      %445 = vmatpush1.msra.mxu0 0.0
      %446 = vmatprep.subr.mxu0 0.0
      %447 = vmatpush1.msra.mxu0 0.0
      %448 = vmatprep.subr.mxu0 0.0
      %449 = vmatpush1.msra.mxu0 0.0
      %450 = vmatprep.subr.mxu0 0.0
      %451 = vmatpush1.msra.mxu0 0.0
      %452 = vmatprep.subr.mxu0 0.0
      %453 = vmatpush1.msra.mxu0 0.0
      %454 = vmatprep.subr.mxu0 0.0
      %455 = vmatpush1.msra.mxu0 0.0
      %456 = vmatprep.subr.mxu0 0.0
      %457 = vmatpush1.msra.mxu0 0.0
      %458 = vmatprep.subr.mxu0 0.0
      %459 = vmatpush1.msra.mxu0 0.0
      %460 = vmatprep.subr.mxu0 0.0
      %461 = vmatpush1.msra.mxu0 0.0
      %462 = vmatprep.subr.mxu0 0.0
      %463 = vmatpush1.msra.mxu0 0.0
      %464 = vmatprep.subr.mxu0 0.0
      %465 = vmatpush1.msra.mxu0 0.0
      %466 = vmatprep.subr.mxu0 0.0
      %467 = vmatpush1.msra.mxu0 0.0
      %468 = vmatprep.subr.mxu0 0.0
      %469 = vmatpush1.msra.mxu0 %v436
      %470 = vmatprep.subr.mxu0 0.0
      %471 = vmatpush2.msra.mxu0 0.0
      %472 = vmatprep.subr.mxu0 0.0
      %473 = vmatpush2.msra.mxu0 0.0
      %474 = vmatprep.subr.mxu0 0.0
      %475 = vmatpush2.msra.mxu0 0.0
      %476 = vmatprep.subr.mxu0 0.0
      %477 = vmatpush2.msra.mxu0 0.0
      %478 = vmatprep.subr.mxu0 0.0
      %479 = vmatpush2.msra.mxu0 0.0
      %480 = vmatprep.subr.mxu0 0.0
      %481 = vmatpush2.msra.mxu0 0.0
      %482 = vmatprep.subr.mxu0 0.0
      %483 = vmatpush2.msra.mxu0 0.0
      %484 = vmatprep.subr.mxu0 0.0
      %485 = vmatpush2.msra.mxu0 0.0
      %486 = vmatprep.subr.mxu0 0.0
      %487 = vmatpush2.msra.mxu0 0.0
      %488 = vmatprep.subr.mxu0 0.0
      %489 = vmatpush2.msra.mxu0 0.0
      %490 = vmatprep.subr.mxu0 0.0
      %491 = vmatpush2.msra.mxu0 0.0
      %492 = vmatprep.subr.mxu0 0.0
      %493 = vmatpush2.msra.mxu0 0.0
      %494 = vmatprep.subr.mxu0 0.0
      %495 = vmatpush2.msra.mxu0 0.0
      %496 = vmatprep.subr.mxu0 0.0
      %497 = vmatpush2.msra.mxu0 0.0
      %498 = vmatprep.subr.mxu0 0.0
      %499 = vmatpush2.msra.mxu0 0.0
      %500 = vmatprep.subr.mxu0 0.0
      %501 = vmatpush2.msra.mxu0 0.0
      %502 = vmatprep.mubr.f32.mxu0 0.0
      %503 = vmatmul.mubr.f32.gmra.mxu0 %v411
      %v504 = vpop.f32.mrf.mxu0
      %v505 = vadd.f32 %v407, %v504
      %v506 = vpop.f32.mrf.mxu0
      %507 = vmatprep.mubr.f32.mxu0 0.0
      %508 = vmatmul.mubr.f32.gmra.mxu0 %v414
      %v509 = vpop.f32.mrf.mxu0
      %v510 = vadd.f32 %v407, %v509
      %v511 = vpop.f32.mrf.mxu0
      %512 = vmatprep.mubr.f32.mxu0 0.0
      %513 = vmatmul.mubr.f32.gmra.mxu0 %v417
      %v514 = vpop.f32.mrf.mxu0
      %v515 = vadd.f32 %v407, %v514
      %v516 = vpop.f32.mrf.mxu0
      %517 = vmatprep.mubr.f32.mxu0 0.0
      %518 = vmatmul.mubr.f32.gmra.mxu0 %v420
      %v519 = vpop.f32.mrf.mxu0
      %v520 = vadd.f32 %v407, %v519
      %v521 = vpop.f32.mrf.mxu0
      %522 = vmatprep.mubr.f32.mxu0 0.0
      %523 = vmatmul.mubr.f32.gmra.mxu0 %v423
      %v524 = vpop.f32.mrf.mxu0
      %v525 = vadd.f32 %v407, %v524
      %v526 = vpop.f32.mrf.mxu0
      %527 = vmatprep.mubr.f32.mxu0 0.0
      %528 = vmatmul.mubr.f32.gmra.mxu0 %v426
      %v529 = vpop.f32.mrf.mxu0
      %v530 = vadd.f32 %v407, %v529
      %v531 = vpop.f32.mrf.mxu0
      %532 = vmatprep.mubr.f32.mxu0 0.0
      %533 = vmatmul.mubr.f32.gmra.mxu0 %v429
      %v534 = vpop.f32.mrf.mxu0
      %v535 = vadd.f32 %v407, %v534
      %v536 = vpop.f32.mrf.mxu0
      %537 = vmatprep.mubr.f32.mxu0 0.0
      %538 = vmatmul.mubr.f32.gmra.mxu0 %v432
      %v539 = vpop.f32.mrf.mxu0
      %v540 = vadd.f32 %v407, %v539
      %v541 = vpop.f32.mrf.mxu0
      %542 = vdwg.mxu0
      %543 = vst [vmem:[%s229] sm:$0xff] %v505
      %544 = vst [vmem:[%s229 + $0x8] sm:$0xff] %v510
      %545 = vst [vmem:[%s229 + $0x10] sm:$0xff] %v515
      %546 = vst [vmem:[%s229 + $0x18] sm:$0xff] %v520
      %547 = vst [vmem:[%s229 + $0x20] sm:$0xff] %v525
      %548 = vst [vmem:[%s229 + $0x28] sm:$0xff] %v530
      %549 = vst [vmem:[%s229 + $0x30] sm:$0xff] %v535
      %550 = vst [vmem:[%s229 + $0x38] sm:$0xff] %v540
      %s551 = smul.u32 8, %s16
      %p552 = scmp.lt.s32.totalorder %s551, 15
      %s553 = scalar_select %p552, %s551, 15
      %s554 = smul.addr %s553, 8
      %s555 = scalar_lea.vmem %s5, %s554
      // Predicated region
      $region41: #{projector_forward.1} parent=39 // pred_check
        %p556 = pneg %p144
      $region42: #{projector_forward.1} parent=39 // pred_check_branch
        %558 = sbr.rel (%p556) target = $region44
      $region43: #{projector_forward.1} parent=39 // pred_region
        %s559 = smul.u32 8, %s16
      $region44: #{projector_forward.1} parent=39 // pred_fallthru
        _
    $region40: #{projector_forward.1} parent=5 // pred_fallthru
      _
    %p560 = scmp.le.s32.totalorder 2, %s11
    // Predicated region
    $region45: #{projector_forward.1} parent=5 // pred_check
      %p561 = pneg %p560
    $region46: #{projector_forward.1} parent=5 // pred_check_branch
      %563 = sbr.rel (%p561) target = $region48
    $region47: #{projector_forward.1} parent=5 // pred_region
      %s564 = ssub.s32 %s11, 2
      // Predicated region
      $region49: #{projector_forward.1} parent=47 // pred_check
        %p565 = pneg %p150
      $region50: #{projector_forward.1} parent=47 // pred_check_branch
        %567 = sbr.rel (%p565) target = $region52
      $region51: #{projector_forward.1} parent=47 // pred_region
        %s568 = smul.u32 8, %s17
        %p569 = scmp.lt.s32.totalorder %s568, 15
        %s570 = scalar_select %p569, %s568, 15
        %s571 = smul.addr %s570, 8
        %s572 = scalar_lea.vmem %s5, %s571
      $region52: #{projector_forward.1} parent=47 // pred_fallthru
        _
    $region48: #{projector_forward.1} parent=5 // pred_fallthru
      _
  $region6: #{projector_forward.1} parent=0 // loop_footer
    %s15 = sadd.s32 1, %s11
  $region7: #{projector_forward.1} parent=0 // loop_footer_branch
    %10 = sbr.rel target = $region3
  $region8: #{projector_forward.1} parent=0 // loop_exit
    _

</llo_original>
